<compile_context>
chip_gen: v7x
topology: tpu7x:2x2x1
jax: 0.10.0
libtpu: 0.0.40
codegen_flags: <defaults>
</compile_context>

<pallas_src>
import jax
import jax.numpy as jnp
import numpy as np
from jax.experimental import pallas as pl
from jax.experimental.pallas import tpu as pltpu


# ----------------------------------------------------------------------------
# Deterministic stand-in for DeepTLF.TDE_encoder.all_conditions (synthetic,
# not loaded from a checkpoint).
# ----------------------------------------------------------------------------
FEATURE_NAMES = ["amount", "mcc", "hour", "weekday"]
CONDITIONS = [
    {"feature": "amount",  "threshold": 0.10},
    {"feature": "amount",  "threshold": -0.25},
    {"feature": "mcc",     "threshold": 0.00},
    {"feature": "hour",    "threshold": 0.50},
    {"feature": "weekday", "threshold": -0.40},
    {"feature": "mcc",     "threshold": 0.75},
]

_LANE = 128          # TPU lane width (last dim of every tile)
_TILE_ROWS = 1024    # sublane rows per grid step: 1024*128 f32 = 512 KiB/feature


def _make_tlf_kernel(feat_idx, thresholds, out_dtype):
    """Kernel factory: feature indices & thresholds are static trace-time consts."""
    feat_idx = tuple(int(i) for i in feat_idx)
    thresholds = tuple(float(t) for t in thresholds)
    # NOTE: comparisons are done in float32 (PyTorch compares in the payload's
    # dtype against a weak python scalar); identical for an f32 payload.

    def kernel(*refs):
        # refs = (x_ref_0, ..., x_ref_{F-1}, o_ref)
        #   x_ref_f : (tile_rows, 128) float32  -- dense (8,128) vregs
        #   o_ref   : (C, tile_rows, 128) out_dtype
        x_refs, o_ref = refs[:-1], refs[-1]
        loaded = {}
        for c, (fi, th) in enumerate(zip(feat_idx, thresholds)):
            if fi not in loaded:                     # load each feature tile once
                loaded[fi] = x_refs[fi][...]
            # Full-tile VPU compare-with-immediate + unmasked dense store.
            o_ref[c] = (loaded[fi] < th).astype(out_dtype)

    return kernel


def trx_encoder_tlf_forward(payload, seq_lens, conditions=CONDITIONS,
                            feature_names=FEATURE_NAMES,
                            out_dtype=jnp.float32):
    """Pallas implementation of TrxEncoderTLF.forward.

    payload: dict name -> (B, T) array
    returns: (out (B, T, C) out_dtype, seq_lens)
    """
    B, T = payload[feature_names[0]].shape
    C = len(conditions)
    N = B * T

    # Lane-dense 2-D layout per feature: (R, 128) with R = cdiv(N, 128).
    # Reshape is free when N % 128 == 0; otherwise only the flat tail is padded.
    R = pl.cdiv(N, _LANE)
    n_pad = R * _LANE

    feats = []
    for name in feature_names:
        x = payload[name].astype(jnp.float32).reshape(-1)
        if n_pad != N:
            x = jnp.pad(x, (0, n_pad - N))
        feats.append(x.reshape(R, _LANE))

    # Row tiling: full extent when small (always (8,128)-legal), otherwise a
    # fixed 1024-row tile (multiple of 8); ragged last block handled by Pallas.
    tile_rows = R if R <= _TILE_ROWS else _TILE_ROWS
    n_steps = pl.cdiv(R, tile_rows)

    kernel = _make_tlf_kernel(
        tuple(feature_names.index(c["feature"]) for c in conditions),
        tuple(float(c["threshold"]) for c in conditions),
        out_dtype,
    )

    out_blocks = pl.pallas_call(
        kernel,
        out_shape=jax.ShapeDtypeStruct((C, R, _LANE), out_dtype),
        grid=(n_steps,),
        in_specs=[pl.BlockSpec((tile_rows, _LANE), lambda i: (i, 0))
                  for _ in feature_names],
        out_specs=pl.BlockSpec((C, tile_rows, _LANE), lambda i: (0, i, 0)),
        compiler_params=pltpu.CompilerParams(
            dimension_semantics=("parallel",)),       # shards across v7x TCs
    )(*feats)

    # Layout plumbing back to the module's (B, T, C) output.  A consumer that
    # accepts the channels-first (C, N) layout could skip this entirely.
    out = out_blocks.reshape(C, n_pad)[:, :N].reshape(C, B, T).transpose(1, 2, 0)
    return out, seq_lens


def output_size():
    return len(CONDITIONS)


if __name__ == "__main__":
    B, T = 2, 8
    key = jax.random.PRNGKey(0)
    keys = jax.random.split(key, len(FEATURE_NAMES))
    payload = {
        name: jax.random.normal(k, (B, T), dtype=jnp.float32)
        for name, k in zip(FEATURE_NAMES, keys)
    }
    seq_lens = jnp.array([T, T - 3], dtype=jnp.int32)

    out, out_lens = trx_encoder_tlf_forward(payload, seq_lens)
    out = jax.block_until_ready(out)

    # Pure-numpy reference (mirrors the PyTorch loop exactly).
    ref = np.stack(
        [np.asarray(payload[c["feature"]]) < c["threshold"] for c in CONDITIONS],
        axis=2,
    ).astype(np.float32)

    assert out.shape == (B, T, output_size()), out.shape
    assert out.dtype == jnp.float32
    np.testing.assert_array_equal(np.asarray(out), ref)
    np.testing.assert_array_equal(np.asarray(out_lens), np.asarray(seq_lens))

    print("KERNEL_OK")
</pallas_src>

<mosaic_0001>
module attributes {stable_mosaic.version = 11 : i64} {
  func.func @kernel(%arg0: i32, %arg1: memref<1x128xf32, #tpu.memory_space<vmem>>, %arg2: memref<1x128xf32, #tpu.memory_space<vmem>>, %arg3: memref<1x128xf32, #tpu.memory_space<vmem>>, %arg4: memref<1x128xf32, #tpu.memory_space<vmem>>, %arg5: memref<6x1x128xf32, #tpu.memory_space<vmem>>) attributes {dimension_semantics = [#tpu.dimension_semantics<parallel>], iteration_bounds = array<i64: 1>, scalar_prefetch = 0 : i64, scratch_operands = 0 : i64, tpu.core_type = #tpu.core_type<tc>, window_params = [{transform_indices = @transform_0, window_bounds = array<i64: 1, 128>}, {transform_indices = @transform_1, window_bounds = array<i64: 1, 128>}, {transform_indices = @transform_2, window_bounds = array<i64: 1, 128>}, {transform_indices = @transform_3, window_bounds = array<i64: 1, 128>}, {transform_indices = @transform_4, window_bounds = array<i64: 6, 1, 128>}]} {
    %c0 = arith.constant 0 : index
    %c0_0 = arith.constant 0 : index
    %0 = vector.load %arg1[%c0, %c0_0] : memref<1x128xf32, #tpu.memory_space<vmem>>, vector<1x128xf32>
    %cst = arith.constant 1.000000e-01 : f32
    %1 = vector.broadcast %cst : f32 to vector<1x128xf32>
    %2 = arith.cmpf olt, %0, %1 : vector<1x128xf32>
    %3 = arith.extui %2 : vector<1x128xi1> to vector<1x128xi32>
    %4 = arith.sitofp %3 : vector<1x128xi32> to vector<1x128xf32>
    %c0_1 = arith.constant 0 : index
    %c0_2 = arith.constant 0 : index
    %c0_3 = arith.constant 0 : index
    %5 = vector.load %arg5[%c0_1, %c0_2, %c0_3] : memref<6x1x128xf32, #tpu.memory_space<vmem>>, vector<1x1x128xf32>
    %6 = vector.shape_cast %5 : vector<1x1x128xf32> to vector<1x128xf32>
    %7 = vector.shape_cast %4 : vector<1x128xf32> to vector<1x1x128xf32>
    tpu.vector_store %arg5[%c0_1, %c0_2, %c0_3], %7 {strides = array<i32>} : memref<6x1x128xf32, #tpu.memory_space<vmem>>, vector<1x1x128xf32>,
    %cst_4 = arith.constant -2.500000e-01 : f32
    %8 = vector.broadcast %cst_4 : f32 to vector<1x128xf32>
    %9 = arith.cmpf olt, %0, %8 : vector<1x128xf32>
    %10 = arith.extui %9 : vector<1x128xi1> to vector<1x128xi32>
    %11 = arith.sitofp %10 : vector<1x128xi32> to vector<1x128xf32>
    %c1 = arith.constant 1 : index
    %c0_5 = arith.constant 0 : index
    %c0_6 = arith.constant 0 : index
    %12 = vector.load %arg5[%c1, %c0_5, %c0_6] : memref<6x1x128xf32, #tpu.memory_space<vmem>>, vector<1x1x128xf32>
    %13 = vector.shape_cast %12 : vector<1x1x128xf32> to vector<1x128xf32>
    %14 = vector.shape_cast %11 : vector<1x128xf32> to vector<1x1x128xf32>
    tpu.vector_store %arg5[%c1, %c0_5, %c0_6], %14 {strides = array<i32>} : memref<6x1x128xf32, #tpu.memory_space<vmem>>, vector<1x1x128xf32>,
    %c0_7 = arith.constant 0 : index
    %c0_8 = arith.constant 0 : index
    %15 = vector.load %arg2[%c0_7, %c0_8] : memref<1x128xf32, #tpu.memory_space<vmem>>, vector<1x128xf32>
    %cst_9 = arith.constant 0.000000e+00 : f32
    %16 = vector.broadcast %cst_9 : f32 to vector<1x128xf32>
    %17 = arith.cmpf olt, %15, %16 : vector<1x128xf32>
    %18 = arith.extui %17 : vector<1x128xi1> to vector<1x128xi32>
    %19 = arith.sitofp %18 : vector<1x128xi32> to vector<1x128xf32>
    %c2 = arith.constant 2 : index
    %c0_10 = arith.constant 0 : index
    %c0_11 = arith.constant 0 : index
    %20 = vector.load %arg5[%c2, %c0_10, %c0_11] : memref<6x1x128xf32, #tpu.memory_space<vmem>>, vector<1x1x128xf32>
    %21 = vector.shape_cast %20 : vector<1x1x128xf32> to vector<1x128xf32>
    %22 = vector.shape_cast %19 : vector<1x128xf32> to vector<1x1x128xf32>
    tpu.vector_store %arg5[%c2, %c0_10, %c0_11], %22 {strides = array<i32>} : memref<6x1x128xf32, #tpu.memory_space<vmem>>, vector<1x1x128xf32>,
    %c0_12 = arith.constant 0 : index
    %c0_13 = arith.constant 0 : index
    %23 = vector.load %arg3[%c0_12, %c0_13] : memref<1x128xf32, #tpu.memory_space<vmem>>, vector<1x128xf32>
    %cst_14 = arith.constant 5.000000e-01 : f32
    %24 = vector.broadcast %cst_14 : f32 to vector<1x128xf32>
    %25 = arith.cmpf olt, %23, %24 : vector<1x128xf32>
    %26 = arith.extui %25 : vector<1x128xi1> to vector<1x128xi32>
    %27 = arith.sitofp %26 : vector<1x128xi32> to vector<1x128xf32>
    %c3 = arith.constant 3 : index
    %c0_15 = arith.constant 0 : index
    %c0_16 = arith.constant 0 : index
    %28 = vector.load %arg5[%c3, %c0_15, %c0_16] : memref<6x1x128xf32, #tpu.memory_space<vmem>>, vector<1x1x128xf32>
    %29 = vector.shape_cast %28 : vector<1x1x128xf32> to vector<1x128xf32>
    %30 = vector.shape_cast %27 : vector<1x128xf32> to vector<1x1x128xf32>
    tpu.vector_store %arg5[%c3, %c0_15, %c0_16], %30 {strides = array<i32>} : memref<6x1x128xf32, #tpu.memory_space<vmem>>, vector<1x1x128xf32>,
    %c0_17 = arith.constant 0 : index
    %c0_18 = arith.constant 0 : index
    %31 = vector.load %arg4[%c0_17, %c0_18] : memref<1x128xf32, #tpu.memory_space<vmem>>, vector<1x128xf32>
    %cst_19 = arith.constant -4.000000e-01 : f32
    %32 = vector.broadcast %cst_19 : f32 to vector<1x128xf32>
    %33 = arith.cmpf olt, %31, %32 : vector<1x128xf32>
    %34 = arith.extui %33 : vector<1x128xi1> to vector<1x128xi32>
    %35 = arith.sitofp %34 : vector<1x128xi32> to vector<1x128xf32>
    %c4 = arith.constant 4 : index
    %c0_20 = arith.constant 0 : index
    %c0_21 = arith.constant 0 : index
    %36 = vector.load %arg5[%c4, %c0_20, %c0_21] : memref<6x1x128xf32, #tpu.memory_space<vmem>>, vector<1x1x128xf32>
    %37 = vector.shape_cast %36 : vector<1x1x128xf32> to vector<1x128xf32>
    %38 = vector.shape_cast %35 : vector<1x128xf32> to vector<1x1x128xf32>
    tpu.vector_store %arg5[%c4, %c0_20, %c0_21], %38 {strides = array<i32>} : memref<6x1x128xf32, #tpu.memory_space<vmem>>, vector<1x1x128xf32>,
    %cst_22 = arith.constant 7.500000e-01 : f32
    %39 = vector.broadcast %cst_22 : f32 to vector<1x128xf32>
    %40 = arith.cmpf olt, %15, %39 : vector<1x128xf32>
    %41 = arith.extui %40 : vector<1x128xi1> to vector<1x128xi32>
    %42 = arith.sitofp %41 : vector<1x128xi32> to vector<1x128xf32>
    %c5 = arith.constant 5 : index
    %c0_23 = arith.constant 0 : index
    %c0_24 = arith.constant 0 : index
    %43 = vector.load %arg5[%c5, %c0_23, %c0_24] : memref<6x1x128xf32, #tpu.memory_space<vmem>>, vector<1x1x128xf32>
    %44 = vector.shape_cast %43 : vector<1x1x128xf32> to vector<1x128xf32>
    %45 = vector.shape_cast %42 : vector<1x128xf32> to vector<1x1x128xf32>
    tpu.vector_store %arg5[%c5, %c0_23, %c0_24], %45 {strides = array<i32>} : memref<6x1x128xf32, #tpu.memory_space<vmem>>, vector<1x1x128xf32>,
    return
  }
  func.func @transform_0(%arg0: i32) -> (i32, i32) {
    %c0_i32 = arith.constant 0 : i32
    %c0_i32_0 = arith.constant 0 : i32
    return %arg0, %c0_i32 : i32, i32
  }
  func.func @transform_1(%arg0: i32) -> (i32, i32) {
    %c0_i32 = arith.constant 0 : i32
    %c0_i32_0 = arith.constant 0 : i32
    return %arg0, %c0_i32 : i32, i32
  }
  func.func @transform_2(%arg0: i32) -> (i32, i32) {
    %c0_i32 = arith.constant 0 : i32
    %c0_i32_0 = arith.constant 0 : i32
    return %arg0, %c0_i32 : i32, i32
  }
  func.func @transform_3(%arg0: i32) -> (i32, i32) {
    %c0_i32 = arith.constant 0 : i32
    %c0_i32_0 = arith.constant 0 : i32
    return %arg0, %c0_i32 : i32, i32
  }
  func.func @transform_4(%arg0: i32) -> (i32, i32, i32) {
    %c0_i32 = arith.constant 0 : i32
    %c0_i32_0 = arith.constant 0 : i32
    %c0_i32_1 = arith.constant 0 : i32
    return %c0_i32, %arg0, %c0_i32_0 : i32, i32, i32
  }
}

</mosaic_0001>

<llo_original>
// kernel: tpu_custom_call.1
$region0: #{tpu_custom_call.1}
  #allocation0 [shape = 'u32[]', space=smem, size = 0x4, offset = 0x4, fixed_abs, tag = 'smem constant byte address 0x4 - core index']
  #allocation1 [shape = 'u32[144,128]{1,0:T(1,128)}', space=vmem, size = 0x12000, scoped, tag = 'internal scratch']
  %s0 = inlined_call_operand.hbm [shape: f32[1,128], index: 0, kind: input, shape index: {}]
  %s1 = inlined_call_operand.vmem [shape: f32[1,128], index: 1, kind: input, shape index: {}]
  %s2 = inlined_call_operand.vmem [shape: f32[1,128], index: 2, kind: input, shape index: {}]
  %s3 = inlined_call_operand.vmem [shape: f32[1,128], index: 3, kind: input, shape index: {}]
  %s4 = inlined_call_operand.hbm [shape: f32[6,1,128], index: 4, kind: output, shape index: {}]
  %s5 = sld [smem:[#allocation0]]
  $region30: #{tpu_custom_call.1} parent=0
    _
  %s7 = ssub.s32 1, %s5
  %s8 = scalar_select 0, %s7, %s5
  $region1: #{tpu_custom_call.1} parent=0
    #allocation2 [shape = 'u8[512]{0}', space=vmem, size = 0x400, scoped, tag = 'input window, operand 0, single buffered']
    #allocation3 [shape = 's32[1]{0}', space=sflag, size = 0x4, scoped, tag = 'scoped memory for tpu_custom_call.1']
    #allocation4 [shape = 's32[1]{0}', space=sflag, size = 0x4, scoped, tag = 'scoped memory for tpu_custom_call.1']
    #allocation5 [shape = 'u8[3072]{0}', space=vmem, size = 0xc00, scoped, tag = 'output window, operand 0, single buffered']
    %9 = vsyncpa [#allocation3], 0
    %10 = vsyncpa [#allocation4], 0
    // Predicated region
    $region2: #{tpu_custom_call.1} parent=1 // pred_check
      _
    $region3: #{tpu_custom_call.1} parent=1 // pred_check_branch
      %12 = sbr.rel (0) target = $region5
    $region4: #{tpu_custom_call.1} parent=1 // pred_region
      %s14 = ssub.s32 16, 16
      %15 = vsyncadd [#allocation3], %s14
      %s17 = sshll.u32 [#allocation2], 4
      %s18 = int_to_ptr.vmem [resolvable:$true] %s17
      %20 = dma.hbm_to_vmem [thread:$0]  %s0, 16, %s18, [#allocation3]
    $region5: #{tpu_custom_call.1} parent=1 // pred_fallthru
      _
    // Predicated region
    $region6: #{tpu_custom_call.1} parent=1 // pred_check
      _
    $region7: #{tpu_custom_call.1} parent=1 // pred_check_branch
      %22 = sbr.rel (0) target = $region9
    $region8: #{tpu_custom_call.1} parent=1 // pred_region
      _
    $region9: #{tpu_custom_call.1} parent=1 // pred_fallthru
      _
    // Predicated region
    $region10: #{tpu_custom_call.1} parent=1 // pred_check
      _
    $region11: #{tpu_custom_call.1} parent=1 // pred_check_branch
      %24 = sbr.rel (0) target = $region13
    $region12: #{tpu_custom_call.1} parent=1 // pred_region
      _
    $region13: #{tpu_custom_call.1} parent=1 // pred_fallthru
      _
    // Predicated region
    $region14: #{tpu_custom_call.1} parent=1 // pred_check
      _
    $region15: #{tpu_custom_call.1} parent=1 // pred_check_branch
      %26 = sbr.rel (0) target = $region17
    $region16: #{tpu_custom_call.1} parent=1 // pred_region
      _
    $region17: #{tpu_custom_call.1} parent=1 // pred_fallthru
      _
    // Predicated region
    $region18: #{tpu_custom_call.1} parent=1 // pred_check
      _
    $region19: #{tpu_custom_call.1} parent=1 // pred_check_branch
      %28 = sbr.rel (0) target = $region21
    $region20: #{tpu_custom_call.1} parent=1 // pred_region
      %29 = dma.done [#allocation3], 16
    $region21: #{tpu_custom_call.1} parent=1 // pred_fallthru
      _
    %v30 = vld [vmem:[#allocation2] sm:$0x1]
    %vm31 = vcmp.lt.f32.partialorder %v30, 0.1
    %v32 = vsel %vm31, 1, 0
    %v33 = vcvt.s32.f32 %v32
    %34 = vst [vmem:[#allocation5] sm:$0x1] %v33
    %vm35 = vcmp.lt.f32.partialorder %v30, -0.25
    %v36 = vsel %vm35, 1, 0
    %v37 = vcvt.s32.f32 %v36
    %s38 = scalar_lea.vmem [#allocation5], 1
    %39 = vst [vmem:[%s38] sm:$0x1] %v37
    %v40 = vld [vmem:[%s1] sm:$0x1]
    %vm41 = vcmp.lt.f32.partialorder %v40, 0.0
    %v42 = vsel %vm41, 1, 0
    %v43 = vcvt.s32.f32 %v42
    %s44 = scalar_lea.vmem [#allocation5], 2
    %45 = vst [vmem:[%s44] sm:$0x1] %v43
    %v46 = vld [vmem:[%s2] sm:$0x1]
    %vm47 = vcmp.lt.f32.partialorder %v46, 0.5
    %v48 = vsel %vm47, 1, 0
    %v49 = vcvt.s32.f32 %v48
    %s50 = scalar_lea.vmem [#allocation5], 3
    %51 = vst [vmem:[%s50] sm:$0x1] %v49
    %v52 = vld [vmem:[%s3] sm:$0x1]
    %vm53 = vcmp.lt.f32.partialorder %v52, -0.4
    %v54 = vsel %vm53, 1, 0
    %v55 = vcvt.s32.f32 %v54
    %s56 = scalar_lea.vmem [#allocation5], 4
    %57 = vst [vmem:[%s56] sm:$0x1] %v55
    %vm58 = vcmp.lt.f32.partialorder %v40, 0.75
    %v59 = vsel %vm58, 1, 0
    %v60 = vcvt.s32.f32 %v59
    %s61 = scalar_lea.vmem [#allocation5], 5
    %62 = vst [vmem:[%s61] sm:$0x1] %v60
    // Predicated region
    $region22: #{tpu_custom_call.1} parent=1 // pred_check
      _
    $region23: #{tpu_custom_call.1} parent=1 // pred_check_branch
      %64 = sbr.rel (0) target = $region25
    $region24: #{tpu_custom_call.1} parent=1 // pred_region
      %s66 = ssub.s32 96, 96
      %67 = vsyncadd [#allocation4], %s66
      %s68 = sshll.u32 [#allocation5], 4
      %s69 = int_to_ptr.vmem [resolvable:$true] %s68
      %74 = dma.vmem_to_hbm [thread:$0]  %s69, 96, %s4, [#allocation4], 16, 16, 1
    $region25: #{tpu_custom_call.1} parent=1 // pred_fallthru
      _
    // Predicated region
    $region26: #{tpu_custom_call.1} parent=1 // pred_check
      _
    $region27: #{tpu_custom_call.1} parent=1 // pred_check_branch
      %76 = sbr.rel (0) target = $region29
    $region28: #{tpu_custom_call.1} parent=1 // pred_region
      %77 = dma.done [#allocation4], 96
    $region29: #{tpu_custom_call.1} parent=1 // pred_fallthru
      _
    %78 = vsyncpa [#allocation3], 1
    %79 = vsyncpa [#allocation4], 1

</llo_original>
